<compile_context>
chip_gen: v5e
topology: v5e:2x2
jax: 0.10.0
libtpu: 0.0.40
codegen_flags: <defaults>
</compile_context>

<pallas_src>
import math
import jax
import jax.numpy as jnp
from jax.experimental import pallas as pl
from jax.experimental.pallas import tpu as pltpu


# ----------------------------------------------------------------------------
# Kernel
# ----------------------------------------------------------------------------
def _mha_kernel_factory(num_heads, head_dim, emb_size, compute_dtype, approx_recip):
    E = emb_size
    D = head_dim

    def kernel(x_ref, wqkv_ref, bqkv_ref, wph_ref, bp_ref, o_ref,
               qkv_scr, acc_scr):
        Bb, N, _ = x_ref.shape  # block shape (static)

        # ---- Fused QKV projection: one MXU matmul, f32 accumulation. ----
        # Cast to compute_dtype ONCE and stage in VMEM scratch so the per-head
        # slices below are ref-backed (live set bounded to one head).
        x2d = x_ref[...].reshape(Bb * N, E)
        qkv = jnp.dot(x2d, wqkv_ref[...], preferred_element_type=jnp.float32)
        qkv_scr[...] = (qkv + bqkv_ref[...]).astype(compute_dtype).reshape(
            Bb, N, 3 * E)

        # ---- Output-projection accumulator, seeded with the projection bias.
        # Per-head contributions are accumulated lane-dense across the full E
        # (no narrow lane-slice stores).
        acc_scr[...] = jnp.broadcast_to(bp_ref[...], (Bb * N, E))

        # TODO(synk): for large N, switch to flash-style KV tiling (extra
        # 'arbitrary' grid axis + online-softmax m/l accumulators under pl.when)
        # so the (Bb, N, N) energy is never materialized.
        # TODO(synk): when head_dim << 128, pad the per-head Q/K columns in
        # _pack_params so the QK^T contraction feeds the full MXU depth.
        for h in range(num_heads):
            lo = h * D
            hi = lo + D
            qh = qkv_scr[:, :, lo:hi]                       # (Bb, N, D)
            kh = qkv_scr[:, :, E + lo:E + hi]               # (Bb, N, D)
            vh = qkv_scr[:, :, 2 * E + lo:2 * E + hi]       # (Bb, N, D)

            # Energy; softmax scale already folded into the Q weights/bias.
            s = jnp.einsum('bqd,bkd->bqk', qh, kh,
                           preferred_element_type=jnp.float32)  # (Bb, N, N) f32
            # TODO(synk): optional boolean mask (mask_fill with f32 min) not
            # implemented; this forward path matches the module with mask=None.
            s = s - jnp.max(s, axis=-1, keepdims=True)
            p = jnp.exp(s)
            denom = jnp.sum(p, axis=-1, keepdims=True)          # (Bb, N, 1)

            # att_drop: eval-mode dropout == identity.
            ctx = jnp.einsum('bqk,bkd->bqd', p.astype(compute_dtype), vh,
                             preferred_element_type=jnp.float32)  # (Bb, N, D)
            # Normalize AFTER the PV matmul (Bb*N*D scales, not Bb*N*N).
            ctx = ctx * pl.reciprocal(denom, approx=approx_recip)

            # Fold this head straight into the output projection (f32 accumulate).
            ctx2d = ctx.astype(compute_dtype).reshape(Bb * N, D)
            acc_scr[...] += jnp.dot(ctx2d, wph_ref[h],
                                    preferred_element_type=jnp.float32)

        o_ref[...] = acc_scr[...].reshape(Bb, N, E).astype(o_ref.dtype)

    return kernel


# ----------------------------------------------------------------------------
# Wrapper helpers
# ----------------------------------------------------------------------------
def _pack_params(params, emb_size, num_heads, compute_dtype):
    """Pre-transpose, fuse QKV, fold softmax scale into Q, split wp per head."""
    inv_scale = 1.0 / (emb_size ** 0.5)  # module divides energy by sqrt(emb_size)
    head_dim = emb_size // num_heads
    wq, bq = params["wq"], params["bq"]
    wk, bk = params["wk"], params["bk"]
    wv, bv = params["wv"], params["bv"]
    wp, bp = params["wp"], params["bp"]
    # nn.Linear weights are (out, in); pass them as (in, out) so the kernel does
    # a plain x @ W with no in-kernel transpose.
    w_qkv = jnp.concatenate([wq.T * inv_scale, wk.T, wv.T], axis=1)       # (E, 3E)
    b_qkv = jnp.concatenate([bq * inv_scale, bk, bv]).reshape(1, 3 * emb_size)
    # Output projection split per head: context feature index = h*D + d.
    wp_heads = wp.T.reshape(num_heads, head_dim, emb_size)                # (H, D, E)
    b_p = bp.reshape(1, emb_size)
    return (w_qkv.astype(compute_dtype), b_qkv.astype(jnp.float32),
            wp_heads.astype(compute_dtype), b_p.astype(jnp.float32))


def _tpu_vmem_and_cores():
    """Best-effort per-TensorCore VMEM capacity and TC count per chip."""
    vmem = None
    try:
        info = pltpu.get_tpu_info()
        vmem = int(getattr(info, "vmem_capacity_bytes", 0)) or None
    except Exception:
        pass
    try:
        kind = jax.devices()[0].device_kind.lower()
    except Exception:
        kind = ""
    is_v7 = "v7" in kind
    if vmem is None:
        # Conservative fallbacks: 64 MiB on v7x, 128 MiB on v5e/v6e.
        vmem = (64 if is_v7 else 128) * 1024 * 1024
    cores = 2 if (is_v7 or vmem <= 96 * 1024 * 1024) else 1
    return vmem, cores


def _pick_batch_block(B, N, E, num_heads, compute_bytes, budget_bytes, num_cores):
    """Batch-tile size from a per-generation VMEM budget with full accounting."""
    D = E // num_heads
    # Grid-invariant operands (single-buffered via pl.Buffered(1)).
    weight_bytes = (3 * E * E + E * E) * compute_bytes + (3 * E + E) * 4
    avail = max(budget_bytes - weight_bytes, 1)
    # Per-batch-row live bytes inside one grid step.
    per_b = (2 * 2 * N * E * compute_bytes   # double-buffered x + out blocks
             + N * 3 * E * 4                 # f32 QKV matmul result (pre-cast)
             + N * 3 * E * compute_bytes     # qkv staging scratch
             + N * E * 4                     # f32 output-projection accumulator
             + 3 * N * N * 4                 # live (N, N) f32 softmax temporaries
             + 2 * N * D * 4)                # per-head context temporaries
    bb = max(1, min(B, avail // max(per_b, 1)))
    if num_cores >= 2 and B >= 2:
        # 2 TensorCores (v7x): keep at least 2 parallel grid steps.
        bb = min(bb, (B + 1) // 2)
    while B % bb:                            # full blocks only (no ragged tail)
        bb -= 1
    return int(bb)


def _const_spec(shape):
    """Grid-invariant operand: constant index_map, single-buffered if supported."""
    idx = lambda i: (0,) * len(shape)
    try:
        return pl.BlockSpec(shape, idx, pipeline_mode=pl.Buffered(1))
    except TypeError:
        # Older Pallas without pipeline_mode: default double-buffering.
        return pl.BlockSpec(shape, idx)


# ----------------------------------------------------------------------------
# Public entry point
# ----------------------------------------------------------------------------
def multi_head_attention(x, params, num_heads, compute_dtype=jnp.bfloat16):
    """x: (B, N, E); params: PyTorch-layout weights/biases. Returns (B, N, E)."""
    B, N, E = x.shape
    assert E % num_heads == 0
    D = E // num_heads
    out_dtype = x.dtype
    approx_recip = jnp.dtype(compute_dtype) != jnp.dtype(jnp.float32)

    w_qkv, b_qkv, wp_heads, b_p = _pack_params(params, E, num_heads, compute_dtype)
    x_c = x.astype(compute_dtype)

    # TODO(synk): pad N to a multiple of 8 / E to a multiple of 128 in the
    # wrapper (with key masking) for fully lane/sublane-aligned reshapes/stores
    # on unaligned shapes.
    vmem_cap, num_cores = _tpu_vmem_and_cores()
    vmem_limit = max(min(int(vmem_cap * 0.8), vmem_cap - (8 << 20)), 16 << 20)
    Bb = _pick_batch_block(B, N, E, num_heads,
                           jnp.dtype(compute_dtype).itemsize,
                           int(vmem_limit * 0.75), num_cores)
    grid = (B // Bb,)

    kernel = _mha_kernel_factory(num_heads, D, E, compute_dtype, approx_recip)

    # Grid-invariant weights/biases (constant index_map -> DMA'd once, reused;
    # single-buffered to halve their VMEM footprint).
    wqkv_spec = _const_spec((E, 3 * E))
    bqkv_spec = _const_spec((1, 3 * E))
    wph_spec = _const_spec((num_heads, D, E))
    bp_spec = _const_spec((1, E))

    return pl.pallas_call(
        kernel,
        out_shape=jax.ShapeDtypeStruct((B, N, E), out_dtype),
        grid_spec=pltpu.PrefetchScalarGridSpec(
            num_scalar_prefetch=0,
            grid=grid,
            in_specs=[
                pl.BlockSpec((Bb, N, E), lambda i: (i, 0, 0)),  # x batch tile
                wqkv_spec, bqkv_spec,                           # fused QKV
                wph_spec, bp_spec,                              # per-head out proj
            ],
            out_specs=pl.BlockSpec((Bb, N, E), lambda i: (i, 0, 0)),
            scratch_shapes=[
                pltpu.VMEM((Bb, N, 3 * E), compute_dtype),  # qkv staging
                pltpu.VMEM((Bb * N, E), jnp.float32),       # projection accumulator
            ],
        ),
        compiler_params=pltpu.CompilerParams(
            dimension_semantics=("parallel",),
            vmem_limit_bytes=int(vmem_limit)),
    )(x_c, w_qkv, b_qkv, wp_heads, b_p)


# ----------------------------------------------------------------------------
# Reference / test
# ----------------------------------------------------------------------------
def init_params(key, emb_size):
    """Deterministic init mimicking nn.Linear default (uniform +/- 1/sqrt(in))."""
    bound = 1.0 / math.sqrt(emb_size)
    keys = jax.random.split(key, 8)

    def lin(kw, kb):
        w = jax.random.uniform(kw, (emb_size, emb_size), jnp.float32, -bound, bound)
        b = jax.random.uniform(kb, (emb_size,), jnp.float32, -bound, bound)
        return w, b

    wq, bq = lin(keys[0], keys[1])
    wk, bk = lin(keys[2], keys[3])
    wv, bv = lin(keys[4], keys[5])
    wp, bp = lin(keys[6], keys[7])
    return dict(wq=wq, bq=bq, wk=wk, bk=bk, wv=wv, bv=bv, wp=wp, bp=bp)


def reference_mha(x, params, num_heads):
    """Pure-JAX reference of the PyTorch forward (eval mode, no mask)."""
    B, N, E = x.shape
    D = E // num_heads
    q = x @ params["wq"].T + params["bq"]
    k = x @ params["wk"].T + params["bk"]
    v = x @ params["wv"].T + params["bv"]

    def split(t):  # b n (h d) -> b h n d
        return t.reshape(B, N, num_heads, D).transpose(0, 2, 1, 3)

    q, k, v = split(q), split(k), split(v)
    energy = jnp.einsum("bhqd,bhkd->bhqk", q, k)
    att = jax.nn.softmax(energy / (E ** 0.5), axis=-1)
    out = jnp.einsum("bhal,bhlv->bhav", att, v)
    out = out.transpose(0, 2, 1, 3).reshape(B, N, E)  # b h n d -> b n (h d)
    return out @ params["wp"].T + params["bp"]


if __name__ == "__main__":
    B, N, E, H = 2, 8, 32, 4  # small shapes consistent with the module layout

    key = jax.random.PRNGKey(0)
    kx, kp = jax.random.split(key)
    x = jax.random.normal(kx, (B, N, E), jnp.float32)
    params = init_params(kp, E)

    ref = reference_mha(x, params, H)

    # f32 compute path (exact reciprocal): checks the fused/scale-folded algorithm.
    out_f32 = jax.block_until_ready(
        multi_head_attention(x, params, H, compute_dtype=jnp.float32))
    assert out_f32.shape == (B, N, E)
    err_f32 = float(jnp.max(jnp.abs(out_f32 - ref)))
    assert err_f32 < 2e-2, f"f32 max err {err_f32}"

    # Performance path: bf16 MXU inputs with f32 accumulation.
    out_bf16 = jax.block_until_ready(
        multi_head_attention(x, params, H, compute_dtype=jnp.bfloat16))
    assert out_bf16.shape == (B, N, E)
    err_bf16 = float(jnp.max(jnp.abs(out_bf16 - ref)))
    assert err_bf16 < 2e-1, f"bf16 max err {err_bf16}"

    print("KERNEL_OK")
</pallas_src>

<mosaic_0001>
module attributes {stable_mosaic.version = 11 : i64} {
  func.func @kernel(%arg0: i32, %arg1: memref<2x8x32xf32, #tpu.memory_space<vmem>>, %arg2: memref<32x96xf32, #tpu.memory_space<vmem>>, %arg3: memref<1x96xf32, #tpu.memory_space<vmem>>, %arg4: memref<4x8x32xf32, #tpu.memory_space<vmem>>, %arg5: memref<1x32xf32, #tpu.memory_space<vmem>>, %arg6: memref<2x8x32xf32, #tpu.memory_space<vmem>>, %arg7: memref<2x8x96xf32, #tpu.memory_space<vmem>>, %arg8: memref<16x32xf32, #tpu.memory_space<vmem>>) attributes {dimension_semantics = [#tpu.dimension_semantics<parallel>], iteration_bounds = array<i64: 1>, scalar_prefetch = 0 : i64, scratch_operands = 2 : i64, tpu.core_type = #tpu.core_type<tc>, window_params = [{transform_indices = @transform_0, window_bounds = array<i64: 2, 8, 32>}, {pipeline_mode = #tpu.pipeline_mode<synchronous>, transform_indices = @transform_1, window_bounds = array<i64: 32, 96>}, {pipeline_mode = #tpu.pipeline_mode<synchronous>, transform_indices = @transform_2, window_bounds = array<i64: 1, 96>}, {pipeline_mode = #tpu.pipeline_mode<synchronous>, transform_indices = @transform_3, window_bounds = array<i64: 4, 8, 32>}, {pipeline_mode = #tpu.pipeline_mode<synchronous>, transform_indices = @transform_4, window_bounds = array<i64: 1, 32>}, {transform_indices = @transform_5, window_bounds = array<i64: 2, 8, 32>}]} {
    %c0 = arith.constant 0 : index
    %c0_0 = arith.constant 0 : index
    %c0_1 = arith.constant 0 : index
    %0 = vector.load %arg1[%c0, %c0_0, %c0_1] : memref<2x8x32xf32, #tpu.memory_space<vmem>>, vector<2x8x32xf32>
    %1 = vector.shape_cast %0 : vector<2x8x32xf32> to vector<16x32xf32>
    %c0_2 = arith.constant 0 : index
    %c0_3 = arith.constant 0 : index
    %2 = vector.load %arg2[%c0_2, %c0_3] : memref<32x96xf32, #tpu.memory_space<vmem>>, vector<32x96xf32>
    %cst = arith.constant dense<0.000000e+00> : vector<16x96xf32>
    %3 = tpu.matmul %1, %2, %cst {dimension_numbers = #tpu.dot_dimension_numbers<[1], [0], [0], [1], [0, 0, 1, 1], [], []>} : vector<16x32xf32>, vector<32x96xf32>, vector<16x96xf32> -> vector<16x96xf32>
    %c0_4 = arith.constant 0 : index
    %c0_5 = arith.constant 0 : index
    %4 = vector.load %arg3[%c0_4, %c0_5] : memref<1x96xf32, #tpu.memory_space<vmem>>, vector<1x96xf32>
    %5 = vector.broadcast %4 : vector<1x96xf32> to vector<16x96xf32>
    %6 = arith.addf %3, %5 : vector<16x96xf32>
    %7 = vector.shape_cast %6 : vector<16x96xf32> to vector<2x8x96xf32>
    %c0_6 = arith.constant 0 : index
    %c0_7 = arith.constant 0 : index
    %c0_8 = arith.constant 0 : index
    %8 = vector.load %arg7[%c0_6, %c0_7, %c0_8] : memref<2x8x96xf32, #tpu.memory_space<vmem>>, vector<2x8x96xf32>
    tpu.vector_store %arg7[%c0_6, %c0_7, %c0_8], %7 {strides = array<i32>} : memref<2x8x96xf32, #tpu.memory_space<vmem>>, vector<2x8x96xf32>,
    %c0_9 = arith.constant 0 : index
    %c0_10 = arith.constant 0 : index
    %9 = vector.load %arg5[%c0_9, %c0_10] : memref<1x32xf32, #tpu.memory_space<vmem>>, vector<1x32xf32>
    %10 = vector.shape_cast %9 : vector<1x32xf32> to vector<1x32xf32>
    %11 = vector.broadcast %10 : vector<1x32xf32> to vector<16x32xf32>
    %c0_11 = arith.constant 0 : index
    %c0_12 = arith.constant 0 : index
    %12 = vector.load %arg8[%c0_11, %c0_12] : memref<16x32xf32, #tpu.memory_space<vmem>>, vector<16x32xf32>
    tpu.vector_store %arg8[%c0_11, %c0_12], %11 {strides = array<i32>} : memref<16x32xf32, #tpu.memory_space<vmem>>, vector<16x32xf32>,
    %c0_13 = arith.constant 0 : index
    %c0_14 = arith.constant 0 : index
    %c0_15 = arith.constant 0 : index
    %13 = vector.load %arg7[%c0_13, %c0_14, %c0_15] : memref<2x8x96xf32, #tpu.memory_space<vmem>>, vector<2x8x8xf32>
    %c0_16 = arith.constant 0 : index
    %c0_17 = arith.constant 0 : index
    %c32 = arith.constant 32 : index
    %14 = vector.load %arg7[%c0_16, %c0_17, %c32] : memref<2x8x96xf32, #tpu.memory_space<vmem>>, vector<2x8x8xf32>
    %c0_18 = arith.constant 0 : index
    %c0_19 = arith.constant 0 : index
    %c64 = arith.constant 64 : index
    %15 = vector.load %arg7[%c0_18, %c0_19, %c64] : memref<2x8x96xf32, #tpu.memory_space<vmem>>, vector<2x8x8xf32>
    "tpu.trace_start"() <{level = 10 : i32, message = "bqd,bkd->bqk"}> : () -> ()
    %cst_20 = arith.constant dense<0.000000e+00> : vector<2x8x8xf32>
    %16 = tpu.matmul %13, %14, %cst_20 {dimension_numbers = #tpu.dot_dimension_numbers<[2], [2], [1], [1], [0, 0, 0, 1, 1, 1], [0], [0]>} : vector<2x8x8xf32>, vector<2x8x8xf32>, vector<2x8x8xf32> -> vector<2x8x8xf32>
    "tpu.trace_stop"() : () -> ()
    %cst_21 = arith.constant dense<0xFF800000> : vector<2x8xf32>
    %17 = vector.multi_reduction <maximumf>, %16, %cst_21 [2] : vector<2x8x8xf32> to vector<2x8xf32>
    %18 = vector.shape_cast %17 : vector<2x8xf32> to vector<2x8x1xf32>
    %19 = vector.broadcast %18 : vector<2x8x1xf32> to vector<2x8x8xf32>
    %20 = arith.subf %16, %19 : vector<2x8x8xf32>
    %21 = math.exp %20 : vector<2x8x8xf32>
    %cst_22 = arith.constant dense<0.000000e+00> : vector<2x8xf32>
    %22 = vector.multi_reduction <add>, %21, %cst_22 [2] : vector<2x8x8xf32> to vector<2x8xf32>
    %23 = vector.shape_cast %22 : vector<2x8xf32> to vector<2x8x1xf32>
    "tpu.trace_start"() <{level = 10 : i32, message = "bqk,bkd->bqd"}> : () -> ()
    %cst_23 = arith.constant dense<0.000000e+00> : vector<2x8x8xf32>
    %24 = tpu.matmul %21, %15, %cst_23 {dimension_numbers = #tpu.dot_dimension_numbers<[2], [1], [1], [2], [0, 0, 0, 1, 1, 2], [0], [0]>} : vector<2x8x8xf32>, vector<2x8x8xf32>, vector<2x8x8xf32> -> vector<2x8x8xf32>
    "tpu.trace_stop"() : () -> ()
    %25 = tpu.reciprocal %23 : vector<2x8x1xf32> -> vector<2x8x1xf32>
    %26 = vector.broadcast %25 : vector<2x8x1xf32> to vector<2x8x8xf32>
    %27 = arith.mulf %24, %26 : vector<2x8x8xf32>
    %28 = vector.shape_cast %27 : vector<2x8x8xf32> to vector<16x8xf32>
    %c0_24 = arith.constant 0 : index
    %c0_25 = arith.constant 0 : index
    %29 = vector.load %arg8[%c0_24, %c0_25] : memref<16x32xf32, #tpu.memory_space<vmem>>, vector<16x32xf32>
    %c0_26 = arith.constant 0 : index
    %c0_27 = arith.constant 0 : index
    %c0_28 = arith.constant 0 : index
    %30 = vector.load %arg4[%c0_26, %c0_27, %c0_28] : memref<4x8x32xf32, #tpu.memory_space<vmem>>, vector<1x8x32xf32>
    %31 = vector.shape_cast %30 : vector<1x8x32xf32> to vector<8x32xf32>
    %cst_29 = arith.constant dense<0.000000e+00> : vector<16x32xf32>
    %32 = tpu.matmul %28, %31, %cst_29 {dimension_numbers = #tpu.dot_dimension_numbers<[1], [0], [0], [1], [0, 0, 1, 1], [], []>} : vector<16x8xf32>, vector<8x32xf32>, vector<16x32xf32> -> vector<16x32xf32>
    %33 = arith.addf %29, %32 : vector<16x32xf32>
    %c0_30 = arith.constant 0 : index
    %c0_31 = arith.constant 0 : index
    %34 = vector.load %arg8[%c0_30, %c0_31] : memref<16x32xf32, #tpu.memory_space<vmem>>, vector<16x32xf32>
    tpu.vector_store %arg8[%c0_30, %c0_31], %33 {strides = array<i32>} : memref<16x32xf32, #tpu.memory_space<vmem>>, vector<16x32xf32>,
    %c0_32 = arith.constant 0 : index
    %c0_33 = arith.constant 0 : index
    %c8 = arith.constant 8 : index
    %35 = vector.load %arg7[%c0_32, %c0_33, %c8] : memref<2x8x96xf32, #tpu.memory_space<vmem>>, vector<2x8x8xf32>
    %c0_34 = arith.constant 0 : index
    %c0_35 = arith.constant 0 : index
    %c40 = arith.constant 40 : index
    %36 = vector.load %arg7[%c0_34, %c0_35, %c40] : memref<2x8x96xf32, #tpu.memory_space<vmem>>, vector<2x8x8xf32>
    %c0_36 = arith.constant 0 : index
    %c0_37 = arith.constant 0 : index
    %c72 = arith.constant 72 : index
    %37 = vector.load %arg7[%c0_36, %c0_37, %c72] : memref<2x8x96xf32, #tpu.memory_space<vmem>>, vector<2x8x8xf32>
    "tpu.trace_start"() <{level = 10 : i32, message = "bqd,bkd->bqk"}> : () -> ()
    %cst_38 = arith.constant dense<0.000000e+00> : vector<2x8x8xf32>
    %38 = tpu.matmul %35, %36, %cst_38 {dimension_numbers = #tpu.dot_dimension_numbers<[2], [2], [1], [1], [0, 0, 0, 1, 1, 1], [0], [0]>} : vector<2x8x8xf32>, vector<2x8x8xf32>, vector<2x8x8xf32> -> vector<2x8x8xf32>
    "tpu.trace_stop"() : () -> ()
    %cst_39 = arith.constant dense<0xFF800000> : vector<2x8xf32>
    %39 = vector.multi_reduction <maximumf>, %38, %cst_39 [2] : vector<2x8x8xf32> to vector<2x8xf32>
    %40 = vector.shape_cast %39 : vector<2x8xf32> to vector<2x8x1xf32>
    %41 = vector.broadcast %40 : vector<2x8x1xf32> to vector<2x8x8xf32>
    %42 = arith.subf %38, %41 : vector<2x8x8xf32>
    %43 = math.exp %42 : vector<2x8x8xf32>
    %cst_40 = arith.constant dense<0.000000e+00> : vector<2x8xf32>
    %44 = vector.multi_reduction <add>, %43, %cst_40 [2] : vector<2x8x8xf32> to vector<2x8xf32>
    %45 = vector.shape_cast %44 : vector<2x8xf32> to vector<2x8x1xf32>
    "tpu.trace_start"() <{level = 10 : i32, message = "bqk,bkd->bqd"}> : () -> ()
    %cst_41 = arith.constant dense<0.000000e+00> : vector<2x8x8xf32>
    %46 = tpu.matmul %43, %37, %cst_41 {dimension_numbers = #tpu.dot_dimension_numbers<[2], [1], [1], [2], [0, 0, 0, 1, 1, 2], [0], [0]>} : vector<2x8x8xf32>, vector<2x8x8xf32>, vector<2x8x8xf32> -> vector<2x8x8xf32>
    "tpu.trace_stop"() : () -> ()
    %47 = tpu.reciprocal %45 : vector<2x8x1xf32> -> vector<2x8x1xf32>
    %48 = vector.broadcast %47 : vector<2x8x1xf32> to vector<2x8x8xf32>
    %49 = arith.mulf %46, %48 : vector<2x8x8xf32>
    %50 = vector.shape_cast %49 : vector<2x8x8xf32> to vector<16x8xf32>
    %c0_42 = arith.constant 0 : index
    %c0_43 = arith.constant 0 : index
    %51 = vector.load %arg8[%c0_42, %c0_43] : memref<16x32xf32, #tpu.memory_space<vmem>>, vector<16x32xf32>
    %c1 = arith.constant 1 : index
    %c0_44 = arith.constant 0 : index
    %c0_45 = arith.constant 0 : index
    %52 = vector.load %arg4[%c1, %c0_44, %c0_45] : memref<4x8x32xf32, #tpu.memory_space<vmem>>, vector<1x8x32xf32>
    %53 = vector.shape_cast %52 : vector<1x8x32xf32> to vector<8x32xf32>
    %cst_46 = arith.constant dense<0.000000e+00> : vector<16x32xf32>
    %54 = tpu.matmul %50, %53, %cst_46 {dimension_numbers = #tpu.dot_dimension_numbers<[1], [0], [0], [1], [0, 0, 1, 1], [], []>} : vector<16x8xf32>, vector<8x32xf32>, vector<16x32xf32> -> vector<16x32xf32>
    %55 = arith.addf %51, %54 : vector<16x32xf32>
    %c0_47 = arith.constant 0 : index
    %c0_48 = arith.constant 0 : index
    %56 = vector.load %arg8[%c0_47, %c0_48] : memref<16x32xf32, #tpu.memory_space<vmem>>, vector<16x32xf32>
    tpu.vector_store %arg8[%c0_47, %c0_48], %55 {strides = array<i32>} : memref<16x32xf32, #tpu.memory_space<vmem>>, vector<16x32xf32>,
    %c0_49 = arith.constant 0 : index
    %c0_50 = arith.constant 0 : index
    %c16 = arith.constant 16 : index
    %57 = vector.load %arg7[%c0_49, %c0_50, %c16] : memref<2x8x96xf32, #tpu.memory_space<vmem>>, vector<2x8x8xf32>
    %c0_51 = arith.constant 0 : index
    %c0_52 = arith.constant 0 : index
    %c48 = arith.constant 48 : index
    %58 = vector.load %arg7[%c0_51, %c0_52, %c48] : memref<2x8x96xf32, #tpu.memory_space<vmem>>, vector<2x8x8xf32>
    %c0_53 = arith.constant 0 : index
    %c0_54 = arith.constant 0 : index
    %c80 = arith.constant 80 : index
    %59 = vector.load %arg7[%c0_53, %c0_54, %c80] : memref<2x8x96xf32, #tpu.memory_space<vmem>>, vector<2x8x8xf32>
    "tpu.trace_start"() <{level = 10 : i32, message = "bqd,bkd->bqk"}> : () -> ()
    %cst_55 = arith.constant dense<0.000000e+00> : vector<2x8x8xf32>
    %60 = tpu.matmul %57, %58, %cst_55 {dimension_numbers = #tpu.dot_dimension_numbers<[2], [2], [1], [1], [0, 0, 0, 1, 1, 1], [0], [0]>} : vector<2x8x8xf32>, vector<2x8x8xf32>, vector<2x8x8xf32> -> vector<2x8x8xf32>
    "tpu.trace_stop"() : () -> ()
    %cst_56 = arith.constant dense<0xFF800000> : vector<2x8xf32>
    %61 = vector.multi_reduction <maximumf>, %60, %cst_56 [2] : vector<2x8x8xf32> to vector<2x8xf32>
    %62 = vector.shape_cast %61 : vector<2x8xf32> to vector<2x8x1xf32>
    %63 = vector.broadcast %62 : vector<2x8x1xf32> to vector<2x8x8xf32>
    %64 = arith.subf %60, %63 : vector<2x8x8xf32>
    %65 = math.exp %64 : vector<2x8x8xf32>
    %cst_57 = arith.constant dense<0.000000e+00> : vector<2x8xf32>
    %66 = vector.multi_reduction <add>, %65, %cst_57 [2] : vector<2x8x8xf32> to vector<2x8xf32>
    %67 = vector.shape_cast %66 : vector<2x8xf32> to vector<2x8x1xf32>
    "tpu.trace_start"() <{level = 10 : i32, message = "bqk,bkd->bqd"}> : () -> ()
    %cst_58 = arith.constant dense<0.000000e+00> : vector<2x8x8xf32>
    %68 = tpu.matmul %65, %59, %cst_58 {dimension_numbers = #tpu.dot_dimension_numbers<[2], [1], [1], [2], [0, 0, 0, 1, 1, 2], [0], [0]>} : vector<2x8x8xf32>, vector<2x8x8xf32>, vector<2x8x8xf32> -> vector<2x8x8xf32>
    "tpu.trace_stop"() : () -> ()
    %69 = tpu.reciprocal %67 : vector<2x8x1xf32> -> vector<2x8x1xf32>
    %70 = vector.broadcast %69 : vector<2x8x1xf32> to vector<2x8x8xf32>
    %71 = arith.mulf %68, %70 : vector<2x8x8xf32>
    %72 = vector.shape_cast %71 : vector<2x8x8xf32> to vector<16x8xf32>
    %c0_59 = arith.constant 0 : index
    %c0_60 = arith.constant 0 : index
    %73 = vector.load %arg8[%c0_59, %c0_60] : memref<16x32xf32, #tpu.memory_space<vmem>>, vector<16x32xf32>
    %c2 = arith.constant 2 : index
    %c0_61 = arith.constant 0 : index
    %c0_62 = arith.constant 0 : index
    %74 = vector.load %arg4[%c2, %c0_61, %c0_62] : memref<4x8x32xf32, #tpu.memory_space<vmem>>, vector<1x8x32xf32>
    %75 = vector.shape_cast %74 : vector<1x8x32xf32> to vector<8x32xf32>
    %cst_63 = arith.constant dense<0.000000e+00> : vector<16x32xf32>
    %76 = tpu.matmul %72, %75, %cst_63 {dimension_numbers = #tpu.dot_dimension_numbers<[1], [0], [0], [1], [0, 0, 1, 1], [], []>} : vector<16x8xf32>, vector<8x32xf32>, vector<16x32xf32> -> vector<16x32xf32>
    %77 = arith.addf %73, %76 : vector<16x32xf32>
    %c0_64 = arith.constant 0 : index
    %c0_65 = arith.constant 0 : index
    %78 = vector.load %arg8[%c0_64, %c0_65] : memref<16x32xf32, #tpu.memory_space<vmem>>, vector<16x32xf32>
    tpu.vector_store %arg8[%c0_64, %c0_65], %77 {strides = array<i32>} : memref<16x32xf32, #tpu.memory_space<vmem>>, vector<16x32xf32>,
    %c0_66 = arith.constant 0 : index
    %c0_67 = arith.constant 0 : index
    %c24 = arith.constant 24 : index
    %79 = vector.load %arg7[%c0_66, %c0_67, %c24] : memref<2x8x96xf32, #tpu.memory_space<vmem>>, vector<2x8x8xf32>
    %c0_68 = arith.constant 0 : index
    %c0_69 = arith.constant 0 : index
    %c56 = arith.constant 56 : index
    %80 = vector.load %arg7[%c0_68, %c0_69, %c56] : memref<2x8x96xf32, #tpu.memory_space<vmem>>, vector<2x8x8xf32>
    %c0_70 = arith.constant 0 : index
    %c0_71 = arith.constant 0 : index
    %c88 = arith.constant 88 : index
    %81 = vector.load %arg7[%c0_70, %c0_71, %c88] : memref<2x8x96xf32, #tpu.memory_space<vmem>>, vector<2x8x8xf32>
    "tpu.trace_start"() <{level = 10 : i32, message = "bqd,bkd->bqk"}> : () -> ()
    %cst_72 = arith.constant dense<0.000000e+00> : vector<2x8x8xf32>
    %82 = tpu.matmul %79, %80, %cst_72 {dimension_numbers = #tpu.dot_dimension_numbers<[2], [2], [1], [1], [0, 0, 0, 1, 1, 1], [0], [0]>} : vector<2x8x8xf32>, vector<2x8x8xf32>, vector<2x8x8xf32> -> vector<2x8x8xf32>
    "tpu.trace_stop"() : () -> ()
    %cst_73 = arith.constant dense<0xFF800000> : vector<2x8xf32>
    %83 = vector.multi_reduction <maximumf>, %82, %cst_73 [2] : vector<2x8x8xf32> to vector<2x8xf32>
    %84 = vector.shape_cast %83 : vector<2x8xf32> to vector<2x8x1xf32>
    %85 = vector.broadcast %84 : vector<2x8x1xf32> to vector<2x8x8xf32>
    %86 = arith.subf %82, %85 : vector<2x8x8xf32>
    %87 = math.exp %86 : vector<2x8x8xf32>
    %cst_74 = arith.constant dense<0.000000e+00> : vector<2x8xf32>
    %88 = vector.multi_reduction <add>, %87, %cst_74 [2] : vector<2x8x8xf32> to vector<2x8xf32>
    %89 = vector.shape_cast %88 : vector<2x8xf32> to vector<2x8x1xf32>
    "tpu.trace_start"() <{level = 10 : i32, message = "bqk,bkd->bqd"}> : () -> ()
    %cst_75 = arith.constant dense<0.000000e+00> : vector<2x8x8xf32>
    %90 = tpu.matmul %87, %81, %cst_75 {dimension_numbers = #tpu.dot_dimension_numbers<[2], [1], [1], [2], [0, 0, 0, 1, 1, 2], [0], [0]>} : vector<2x8x8xf32>, vector<2x8x8xf32>, vector<2x8x8xf32> -> vector<2x8x8xf32>
    "tpu.trace_stop"() : () -> ()
    %91 = tpu.reciprocal %89 : vector<2x8x1xf32> -> vector<2x8x1xf32>
    %92 = vector.broadcast %91 : vector<2x8x1xf32> to vector<2x8x8xf32>
    %93 = arith.mulf %90, %92 : vector<2x8x8xf32>
    %94 = vector.shape_cast %93 : vector<2x8x8xf32> to vector<16x8xf32>
    %c0_76 = arith.constant 0 : index
    %c0_77 = arith.constant 0 : index
    %95 = vector.load %arg8[%c0_76, %c0_77] : memref<16x32xf32, #tpu.memory_space<vmem>>, vector<16x32xf32>
    %c3 = arith.constant 3 : index
    %c0_78 = arith.constant 0 : index
    %c0_79 = arith.constant 0 : index
    %96 = vector.load %arg4[%c3, %c0_78, %c0_79] : memref<4x8x32xf32, #tpu.memory_space<vmem>>, vector<1x8x32xf32>
    %97 = vector.shape_cast %96 : vector<1x8x32xf32> to vector<8x32xf32>
    %cst_80 = arith.constant dense<0.000000e+00> : vector<16x32xf32>
    %98 = tpu.matmul %94, %97, %cst_80 {dimension_numbers = #tpu.dot_dimension_numbers<[1], [0], [0], [1], [0, 0, 1, 1], [], []>} : vector<16x8xf32>, vector<8x32xf32>, vector<16x32xf32> -> vector<16x32xf32>
    %99 = arith.addf %95, %98 : vector<16x32xf32>
    %c0_81 = arith.constant 0 : index
    %c0_82 = arith.constant 0 : index
    %100 = vector.load %arg8[%c0_81, %c0_82] : memref<16x32xf32, #tpu.memory_space<vmem>>, vector<16x32xf32>
    tpu.vector_store %arg8[%c0_81, %c0_82], %99 {strides = array<i32>} : memref<16x32xf32, #tpu.memory_space<vmem>>, vector<16x32xf32>,
    %c0_83 = arith.constant 0 : index
    %c0_84 = arith.constant 0 : index
    %101 = vector.load %arg8[%c0_83, %c0_84] : memref<16x32xf32, #tpu.memory_space<vmem>>, vector<16x32xf32>
    %102 = vector.shape_cast %101 : vector<16x32xf32> to vector<2x8x32xf32>
    %c0_85 = arith.constant 0 : index
    %c0_86 = arith.constant 0 : index
    %c0_87 = arith.constant 0 : index
    %103 = vector.load %arg6[%c0_85, %c0_86, %c0_87] : memref<2x8x32xf32, #tpu.memory_space<vmem>>, vector<2x8x32xf32>
    tpu.vector_store %arg6[%c0_85, %c0_86, %c0_87], %102 {strides = array<i32>} : memref<2x8x32xf32, #tpu.memory_space<vmem>>, vector<2x8x32xf32>,
    return
  }
  func.func @transform_0(%arg0: i32) -> (i32, i32, i32) {
    %c0_i32 = arith.constant 0 : i32
    %c0_i32_0 = arith.constant 0 : i32
    %c0_i32_1 = arith.constant 0 : i32
    return %arg0, %c0_i32, %c0_i32_0 : i32, i32, i32
  }
  func.func @transform_1(%arg0: i32) -> (i32, i32) {
    %c0_i32 = arith.constant 0 : i32
    %c0_i32_0 = arith.constant 0 : i32
    %c0_i32_1 = arith.constant 0 : i32
    return %c0_i32, %c0_i32_0 : i32, i32
  }
  func.func @transform_2(%arg0: i32) -> (i32, i32) {
    %c0_i32 = arith.constant 0 : i32
    %c0_i32_0 = arith.constant 0 : i32
    %c0_i32_1 = arith.constant 0 : i32
    return %c0_i32, %c0_i32_0 : i32, i32
  }
  func.func @transform_3(%arg0: i32) -> (i32, i32, i32) {
    %c0_i32 = arith.constant 0 : i32
    %c0_i32_0 = arith.constant 0 : i32
    %c0_i32_1 = arith.constant 0 : i32
    %c0_i32_2 = arith.constant 0 : i32
    return %c0_i32, %c0_i32_0, %c0_i32_1 : i32, i32, i32
  }
  func.func @transform_4(%arg0: i32) -> (i32, i32) {
    %c0_i32 = arith.constant 0 : i32
    %c0_i32_0 = arith.constant 0 : i32
    %c0_i32_1 = arith.constant 0 : i32
    return %c0_i32, %c0_i32_0 : i32, i32
  }
  func.func @transform_5(%arg0: i32) -> (i32, i32, i32) {
    %c0_i32 = arith.constant 0 : i32
    %c0_i32_0 = arith.constant 0 : i32
    %c0_i32_1 = arith.constant 0 : i32
    return %arg0, %c0_i32, %c0_i32_0 : i32, i32, i32
  }
}

</mosaic_0001>

<llo_original>
// kernel: tpu_custom_call.1
$region0: #{tpu_custom_call.1}
  #allocation0 [shape = 'u32[]', space=smem, size = 0x4, offset = 0x4, fixed_abs, tag = 'smem constant byte address 0x4 - core index']
  #allocation1 [shape = 'u32[72,128]{1,0:T(1,128)}', space=vmem, size = 0x9000, scoped, tag = 'internal scratch']
  #allocation2 [shape = 'f32[2,8,96]{2,1,0:T(8,128)}', space=vmem, size = 0x2000, scoped, tag = 'scratch operand']
  #allocation3 [shape = 'f32[16,32]{1,0:T(8,128)}', space=vmem, size = 0x2000, scoped, tag = 'scratch operand']
  %s0 = inlined_call_operand.hbm [shape: f32[2,8,32], index: 0, kind: input, shape index: {}]
  %s1 = inlined_call_operand.hbm [shape: f32[32,96], index: 1, kind: input, shape index: {}]
  %s2 = inlined_call_operand.vmem [shape: f32[1,96], index: 2, kind: input, shape index: {}]
  %s3 = inlined_call_operand.hbm [shape: f32[4,8,32], index: 3, kind: input, shape index: {}]
  %s4 = inlined_call_operand.vmem [shape: f32[1,32], index: 4, kind: input, shape index: {}]
  %s5 = inlined_call_operand.hbm [shape: f32[2,8,32], index: 5, kind: output, shape index: {}]
  %s6 = sld [smem:[#allocation0]]
  $region42: #{tpu_custom_call.1} parent=0
    _
  %s8 = ssub.s32 1, %s6
  %s9 = scalar_select 0, %s8, %s6
  $region1: #{tpu_custom_call.1} parent=0
    #allocation4 [shape = 'u8[8192]{0}', space=vmem, size = 0x2000, scoped, tag = 'input window, operand 0, single buffered']
    #allocation5 [shape = 's32[1]{0}', space=sflag, size = 0x4, scoped, tag = 'scoped memory for tpu_custom_call.1']
    #allocation6 [shape = 's32[1]{0}', space=sflag, size = 0x4, scoped, tag = 'scoped memory for tpu_custom_call.1']
    #allocation7 [shape = 'u8[16384]{0}', space=vmem, size = 0x4000, scoped, tag = 'input window, operand 1, single buffered']
    #allocation8 [shape = 's32[1]{0}', space=sflag, size = 0x4, scoped, tag = 'scoped memory for tpu_custom_call.1']
    #allocation9 [shape = 'u8[16384]{0}', space=vmem, size = 0x4000, scoped, tag = 'input window, operand 3, single buffered']
    #allocation10 [shape = 'u8[8192]{0}', space=vmem, size = 0x2000, scoped, tag = 'output window, operand 0, single buffered']
    %10 = vsyncpa [#allocation5], 0
    %11 = vsyncpa [#allocation8], 0
    %12 = vsyncpa [#allocation6], 0
    // Predicated region
    $region2: #{tpu_custom_call.1} parent=1 // pred_check
      _
    $region3: #{tpu_custom_call.1} parent=1 // pred_check_branch
      %14 = sbr.rel (0) target = $region5
    $region4: #{tpu_custom_call.1} parent=1 // pred_region
      %16 = vsyncadd [#allocation5], 0
      %s17 = sshll.u32 %s0, 4
      %s18 = int_to_ptr.hbm [resolvable:$true] %s17
      %s19 = sshll.u32 [#allocation4], 4
      %s20 = int_to_ptr.vmem [resolvable:$true] %s19
      %25 = dma.hbm_to_vmem [thread:$0]  %s18, 256, %s20, [#allocation5], 128, 128, 8
    $region5: #{tpu_custom_call.1} parent=1 // pred_fallthru
      _
    // Predicated region
    $region6: #{tpu_custom_call.1} parent=1 // pred_check
      _
    $region7: #{tpu_custom_call.1} parent=1 // pred_check_branch
      %27 = sbr.rel (0) target = $region9
    $region8: #{tpu_custom_call.1} parent=1 // pred_region
      %29 = vsyncadd [#allocation8], 0
      %s30 = sshll.u32 %s1, 4
      %s31 = int_to_ptr.hbm [resolvable:$true] %s30
      %s32 = sshll.u32 [#allocation7], 4
      %s33 = int_to_ptr.vmem [resolvable:$true] %s32
      %38 = dma.hbm_to_vmem [thread:$0]  %s31, 512, %s33, [#allocation8], 128, 128, 8
    $region9: #{tpu_custom_call.1} parent=1 // pred_fallthru
      _
    // Predicated region
    $region10: #{tpu_custom_call.1} parent=1 // pred_check
      _
    $region11: #{tpu_custom_call.1} parent=1 // pred_check_branch
      %40 = sbr.rel (0) target = $region13
    $region12: #{tpu_custom_call.1} parent=1 // pred_region
      _
    $region13: #{tpu_custom_call.1} parent=1 // pred_fallthru
      _
    // Predicated region
    $region14: #{tpu_custom_call.1} parent=1 // pred_check
      _
    $region15: #{tpu_custom_call.1} parent=1 // pred_check_branch
      %42 = sbr.rel (0) target = $region17
    $region16: #{tpu_custom_call.1} parent=1 // pred_region
      %44 = vsyncadd [#allocation8], 0
      %s45 = sshll.u32 %s3, 4
      %s46 = int_to_ptr.hbm [resolvable:$true] %s45
      %s47 = sshll.u32 [#allocation9], 4
      %s48 = int_to_ptr.vmem [resolvable:$true] %s47
      %53 = dma.hbm_to_vmem [thread:$0]  %s46, 512, %s48, [#allocation8], 128, 128, 8
    $region17: #{tpu_custom_call.1} parent=1 // pred_fallthru
      _
    // Predicated region
    $region18: #{tpu_custom_call.1} parent=1 // pred_check
      _
    $region19: #{tpu_custom_call.1} parent=1 // pred_check_branch
      %55 = sbr.rel (0) target = $region21
    $region20: #{tpu_custom_call.1} parent=1 // pred_region
      _
    $region21: #{tpu_custom_call.1} parent=1 // pred_fallthru
      _
    // Predicated region
    $region22: #{tpu_custom_call.1} parent=1 // pred_check
      _
    $region23: #{tpu_custom_call.1} parent=1 // pred_check_branch
      %57 = sbr.rel (0) target = $region25
    $region24: #{tpu_custom_call.1} parent=1 // pred_region
      %59 = dma.done [#allocation5], 256
    $region25: #{tpu_custom_call.1} parent=1 // pred_fallthru
      _
    // Predicated region
    $region26: #{tpu_custom_call.1} parent=1 // pred_check
      _
    $region27: #{tpu_custom_call.1} parent=1 // pred_check_branch
      %61 = sbr.rel (0) target = $region29
    $region28: #{tpu_custom_call.1} parent=1 // pred_region
      %63 = dma.done [#allocation8], 512
    $region29: #{tpu_custom_call.1} parent=1 // pred_fallthru
      _
    // Predicated region
    $region30: #{tpu_custom_call.1} parent=1 // pred_check
      _
    $region31: #{tpu_custom_call.1} parent=1 // pred_check_branch
      %65 = sbr.rel (0) target = $region33
    $region32: #{tpu_custom_call.1} parent=1 // pred_region
      %67 = dma.done [#allocation8], 512
    $region33: #{tpu_custom_call.1} parent=1 // pred_fallthru
      _
    %v68 = vld [vmem:[#allocation4] sm:$0xff]
    %v69 = vld [vmem:[#allocation4 + $0x8] sm:$0xff]
    %v70 = vld [vmem:[#allocation7] sm:$0xff]
    %v71 = vld [vmem:[#allocation7 + $0x8] sm:$0xff]
    %v72 = vld [vmem:[#allocation7 + $0x10] sm:$0xff]
    %v73 = vld [vmem:[#allocation7 + $0x18] sm:$0xff]
    %v74 = vld [vmem:[%s2] sm:$0x1]
    %v76 = vperm.slane %v74, 0
    %vm78 = vcmask 261120
    %v80 = vsel %vm78, %v68, 0
    %v83 = vsel %vm78, %v69, 0
    %85 = vmatpush.msra.mxu0 0.0
    %86 = vmatpush.msra.mxu0 0.0
    %87 = vmatpush.msra.mxu0 0.0
    %88 = vmatpush.msra.mxu0 0.0
    %89 = vmatpush.msra.mxu0 0.0
    %90 = vmatpush.msra.mxu0 0.0
    %91 = vmatpush.msra.mxu0 0.0
    %92 = vmatpush.msra.mxu0 0.0
    %93 = vmatpush.msra.mxu0 0.0
    %94 = vmatpush.msra.mxu0 0.0
    %95 = vmatpush.msra.mxu0 0.0
    %96 = vmatpush.msra.mxu0 0.0
    %97 = vmatpush.msra.mxu0 %v73
    %98 = vmatpush.msra.mxu0 %v72
    %99 = vmatpush.msra.mxu0 %v71
    %100 = vmatpush.msra.mxu0 %v70
    %101 = vmatmul.f32.gmra.mxu0 %v80
    %v102 = vpop.f32.mrf.mxu0
    %v103 = vadd.f32 %v76, %v102
    %104 = vmatmul.f32.gmra.mxu0 %v83
    %v105 = vpop.f32.mrf.mxu0
    %v106 = vadd.f32 %v76, %v105
    %107 = vdwg.mxu0
    %vm108 = vcmask 785408
    %109 = vst.msk [vmem:[#allocation2] sm:$0xff] %vm108, %v103
    %110 = vst.msk [vmem:[#allocation2 + $0x8] sm:$0xff] %vm108, %v106
    %v111 = vld [vmem:[%s4] sm:$0x1]
    %v113 = vperm.slane %v111, 0
    %115 = vst.msk [vmem:[#allocation3] sm:$0xff] %vm78, %v113
    %116 = vst.msk [vmem:[#allocation3 + $0x8] sm:$0xff] %vm78, %v113
    %v117 = vld [vmem:[#allocation2] sm:$0xff]
    %v118 = vld [vmem:[#allocation2 + $0x8] sm:$0xff]
    %120 = vrot.lane.b32.xlu0 %v117, 96
    %v121 = vpop.permute.xlu0 %120
    %vm122 = vcmask 64512
    %v123 = vsel %vm122, %v117, 0
    %v125 = vsel %vm122, %v121, 0
    %127 = vmatpush.xpose.msra.mxu0 0.0
    %128 = vmatpush.xpose.msra.mxu0 0.0
    %129 = vmatpush.xpose.msra.mxu0 0.0
    %130 = vmatpush.xpose.msra.mxu0 0.0
    %131 = vmatpush.xpose.msra.mxu0 0.0
    %132 = vmatpush.xpose.msra.mxu0 0.0
    %133 = vmatpush.xpose.msra.mxu0 0.0
    %134 = vmatpush.xpose.msra.mxu0 0.0
    %135 = vmatpush.xpose.msra.mxu0 0.0
    %136 = vmatpush.xpose.msra.mxu0 0.0
    %137 = vmatpush.xpose.msra.mxu0 0.0
    %138 = vmatpush.xpose.msra.mxu0 0.0
    %139 = vmatpush.xpose.msra.mxu0 0.0
    %140 = vmatpush.xpose.msra.mxu0 0.0
    %141 = vmatpush.xpose.msra.mxu0 0.0
    %142 = vmatpush.xpose.msra.mxu0 %v125
    %143 = vmatmul.f32.gmra.mxu0 %v123
    %v144 = vpop.f32.mrf.mxu0
    %v145 = vadd.f32 0.0, %v144
    %146 = vdwg.mxu0
    %148 = vrot.lane.b32.xlu0 %v118, 96
    %v149 = vpop.permute.xlu0 %148
    %v150 = vsel %vm122, %v118, 0
    %v152 = vsel %vm122, %v149, 0
    %154 = vmatpush.xpose.msra.mxu0 0.0
    %155 = vmatpush.xpose.msra.mxu0 0.0
    %156 = vmatpush.xpose.msra.mxu0 0.0
    %157 = vmatpush.xpose.msra.mxu0 0.0
    %158 = vmatpush.xpose.msra.mxu0 0.0
    %159 = vmatpush.xpose.msra.mxu0 0.0
    %160 = vmatpush.xpose.msra.mxu0 0.0
    %161 = vmatpush.xpose.msra.mxu0 0.0
    %162 = vmatpush.xpose.msra.mxu0 0.0
    %163 = vmatpush.xpose.msra.mxu0 0.0
    %164 = vmatpush.xpose.msra.mxu0 0.0
    %165 = vmatpush.xpose.msra.mxu0 0.0
    %166 = vmatpush.xpose.msra.mxu0 0.0
    %167 = vmatpush.xpose.msra.mxu0 0.0
    %168 = vmatpush.xpose.msra.mxu0 0.0
    %169 = vmatpush.xpose.msra.mxu0 %v152
    %170 = vmatmul.f32.gmra.mxu0 %v150
    %v171 = vpop.f32.mrf.mxu0
    %v172 = vadd.f32 0.0, %v171
    %173 = vdwg.mxu0
    %v174 = vsel %vm122, %v145, -inf
    %175 = vmax.xlane.f32.xlu0 %v174
    %v176 = vpop.xlane.xlu0 %175
    %v177 = vsel %vm122, %v172, -inf
    %178 = vmax.xlane.f32.xlu0 %v177
    %v179 = vpop.xlane.xlu0 %178
    %v180 = vsub.f32 %v145, %v176
    %v181 = vsub.f32 %v172, %v179
    %v182 = vmul.f32 %v180, 1.442695
    %v183 = vpow.pop %v182
    %v184 = vmul.f32 %v181, 1.442695
    %v185 = vpow.pop %v184
    %v186 = vsel %vm122, %v183, 0.0
    %187 = vadd.xlane.f32.xlu0 %v186
    %v188 = vpop.xlane.xlu0 %187
    %v189 = vsel %vm122, %v185, 0.0
    %190 = vadd.xlane.f32.xlu0 %v189
    %v191 = vpop.xlane.xlu0 %190
    %192 = vrot.lane.b32.xlu0 %v117, 64
    %v193 = vpop.permute.xlu0 %192
    %v196 = vsel %vm122, %v183, 0
    %198 = vmatpush.msra.mxu0 0.0
    %199 = vmatpush.msra.mxu0 0.0
    %200 = vmatpush.msra.mxu0 0.0
    %201 = vmatpush.msra.mxu0 0.0
    %202 = vmatpush.msra.mxu0 0.0
    %203 = vmatpush.msra.mxu0 0.0
    %204 = vmatpush.msra.mxu0 0.0
    %205 = vmatpush.msra.mxu0 0.0
    %206 = vmatpush.msra.mxu0 0.0
    %207 = vmatpush.msra.mxu0 0.0
    %208 = vmatpush.msra.mxu0 0.0
    %209 = vmatpush.msra.mxu0 0.0
    %210 = vmatpush.msra.mxu0 0.0
    %211 = vmatpush.msra.mxu0 0.0
    %212 = vmatpush.msra.mxu0 0.0
    %213 = vmatpush.msra.mxu0 %v193
    %214 = vmatmul.f32.gmra.mxu0 %v196
    %v215 = vpop.f32.mrf.mxu0
    %v216 = vadd.f32 0.0, %v215
    %217 = vdwg.mxu0
    %218 = vrot.lane.b32.xlu0 %v118, 64
    %v219 = vpop.permute.xlu0 %218
    %v222 = vsel %vm122, %v185, 0
    %224 = vmatpush.msra.mxu0 0.0
    %225 = vmatpush.msra.mxu0 0.0
    %226 = vmatpush.msra.mxu0 0.0
    %227 = vmatpush.msra.mxu0 0.0
    %228 = vmatpush.msra.mxu0 0.0
    %229 = vmatpush.msra.mxu0 0.0
    %230 = vmatpush.msra.mxu0 0.0
    %231 = vmatpush.msra.mxu0 0.0
    %232 = vmatpush.msra.mxu0 0.0
    %233 = vmatpush.msra.mxu0 0.0
    %234 = vmatpush.msra.mxu0 0.0
    %235 = vmatpush.msra.mxu0 0.0
    %236 = vmatpush.msra.mxu0 0.0
    %237 = vmatpush.msra.mxu0 0.0
    %238 = vmatpush.msra.mxu0 0.0
    %239 = vmatpush.msra.mxu0 %v219
    %240 = vmatmul.f32.gmra.mxu0 %v222
    %v241 = vpop.f32.mrf.mxu0
    %v242 = vadd.f32 0.0, %v241
    %243 = vdwg.mxu0
    %v244 = vrcp.pop %v188
    %v245 = vmul.f32 %v188, %v244
    %v246 = vsub.f32 1.0, %v245
    %v247 = vmul.f32 %v244, %v246
    %v248 = vadd.f32 %v244, %v247
    %vm249 = vweird.f32 %v188
    %vm250 = vweird.f32 %v244
    %vm251 = vmor %vm249, %vm250
    %v252 = vsel %vm251, %v244, %v248
    %v253 = vand.u32 2147483647, %v188
    %vm254 = vcmp.eq.f32.partialorder %v253, 8.507059e+37
    %v255 = vand.u32 %v188, 2147483648
    %v256 = vor.u32 1.1754944e-38, %v255
    %v257 = vsel %vm254, %v256, %v252
    %v258 = vrcp.pop %v191
    %v259 = vmul.f32 %v191, %v258
    %v260 = vsub.f32 1.0, %v259
    %v261 = vmul.f32 %v258, %v260
    %v262 = vadd.f32 %v258, %v261
    %vm263 = vweird.f32 %v191
    %vm264 = vweird.f32 %v258
    %vm265 = vmor %vm263, %vm264
    %v266 = vsel %vm265, %v258, %v262
    %v267 = vand.u32 2147483647, %v191
    %vm268 = vcmp.eq.f32.partialorder %v267, 8.507059e+37
    %v269 = vand.u32 %v191, 2147483648
    %v270 = vor.u32 1.1754944e-38, %v269
    %v271 = vsel %vm268, %v270, %v266
    %v272 = vmul.f32 %v216, %v257
    %v273 = vmul.f32 %v242, %v271
    %v274 = vld [vmem:[#allocation3] sm:$0xff]
    %v275 = vld [vmem:[#allocation3 + $0x8] sm:$0xff]
    %v276 = vld [vmem:[#allocation9] sm:$0xff]
    %v278 = vsel %vm122, %v272, 0
    %v281 = vsel %vm122, %v273, 0
    %283 = vmatpush.msra.mxu0 0.0
    %284 = vmatpush.msra.mxu0 0.0
    %285 = vmatpush.msra.mxu0 0.0
    %286 = vmatpush.msra.mxu0 0.0
    %287 = vmatpush.msra.mxu0 0.0
    %288 = vmatpush.msra.mxu0 0.0
    %289 = vmatpush.msra.mxu0 0.0
    %290 = vmatpush.msra.mxu0 0.0
    %291 = vmatpush.msra.mxu0 0.0
    %292 = vmatpush.msra.mxu0 0.0
    %293 = vmatpush.msra.mxu0 0.0
    %294 = vmatpush.msra.mxu0 0.0
    %295 = vmatpush.msra.mxu0 0.0
    %296 = vmatpush.msra.mxu0 0.0
    %297 = vmatpush.msra.mxu0 0.0
    %298 = vmatpush.msra.mxu0 %v276
    %299 = vmatmul.f32.gmra.mxu0 %v278
    %v300 = vpop.f32.mrf.mxu0
    %v301 = vadd.f32 0.0, %v300
    %302 = vmatmul.f32.gmra.mxu0 %v281
    %v303 = vpop.f32.mrf.mxu0
    %v304 = vadd.f32 0.0, %v303
    %305 = vdwg.mxu0
    %v306 = vadd.f32 %v274, %v301
    %v307 = vadd.f32 %v275, %v304
    %308 = vst.msk [vmem:[#allocation3] sm:$0xff] %vm78, %v306
    %309 = vst.msk [vmem:[#allocation3 + $0x8] sm:$0xff] %vm78, %v307
    %v310 = vld [vmem:[#allocation2] sm:$0xff]
    %v311 = vld [vmem:[#allocation2 + $0x8] sm:$0xff]
    %313 = vrot.lane.b32.xlu0 %v310, 120
    %v314 = vpop.permute.xlu0 %313
    %315 = vrot.lane.b32.xlu0 %v310, 88
    %v316 = vpop.permute.xlu0 %315
    %v317 = vsel %vm122, %v314, 0
    %v319 = vsel %vm122, %v316, 0
    %321 = vmatpush.xpose.msra.mxu0 0.0
    %322 = vmatpush.xpose.msra.mxu0 0.0
    %323 = vmatpush.xpose.msra.mxu0 0.0
    %324 = vmatpush.xpose.msra.mxu0 0.0
    %325 = vmatpush.xpose.msra.mxu0 0.0
    %326 = vmatpush.xpose.msra.mxu0 0.0
    %327 = vmatpush.xpose.msra.mxu0 0.0
    %328 = vmatpush.xpose.msra.mxu0 0.0
    %329 = vmatpush.xpose.msra.mxu0 0.0
    %330 = vmatpush.xpose.msra.mxu0 0.0
    %331 = vmatpush.xpose.msra.mxu0 0.0
    %332 = vmatpush.xpose.msra.mxu0 0.0
    %333 = vmatpush.xpose.msra.mxu0 0.0
    %334 = vmatpush.xpose.msra.mxu0 0.0
    %335 = vmatpush.xpose.msra.mxu0 0.0
    %336 = vmatpush.xpose.msra.mxu0 %v319
    %337 = vmatmul.f32.gmra.mxu0 %v317
    %v338 = vpop.f32.mrf.mxu0
    %v339 = vadd.f32 0.0, %v338
    %340 = vdwg.mxu0
    %342 = vrot.lane.b32.xlu0 %v311, 120
    %v343 = vpop.permute.xlu0 %342
    %344 = vrot.lane.b32.xlu0 %v311, 88
    %v345 = vpop.permute.xlu0 %344
    %v346 = vsel %vm122, %v343, 0
    %v348 = vsel %vm122, %v345, 0
    %350 = vmatpush.xpose.msra.mxu0 0.0
    %351 = vmatpush.xpose.msra.mxu0 0.0
    %352 = vmatpush.xpose.msra.mxu0 0.0
    %353 = vmatpush.xpose.msra.mxu0 0.0
    %354 = vmatpush.xpose.msra.mxu0 0.0
    %355 = vmatpush.xpose.msra.mxu0 0.0
    %356 = vmatpush.xpose.msra.mxu0 0.0
    %357 = vmatpush.xpose.msra.mxu0 0.0
    %358 = vmatpush.xpose.msra.mxu0 0.0
    %359 = vmatpush.xpose.msra.mxu0 0.0
    %360 = vmatpush.xpose.msra.mxu0 0.0
    %361 = vmatpush.xpose.msra.mxu0 0.0
    %362 = vmatpush.xpose.msra.mxu0 0.0
    %363 = vmatpush.xpose.msra.mxu0 0.0
    %364 = vmatpush.xpose.msra.mxu0 0.0
    %365 = vmatpush.xpose.msra.mxu0 %v348
    %366 = vmatmul.f32.gmra.mxu0 %v346
    %v367 = vpop.f32.mrf.mxu0
    %v368 = vadd.f32 0.0, %v367
    %369 = vdwg.mxu0
    %v370 = vsel %vm122, %v339, -inf
    %371 = vmax.xlane.f32.xlu0 %v370
    %v372 = vpop.xlane.xlu0 %371
    %v373 = vsel %vm122, %v368, -inf
    %374 = vmax.xlane.f32.xlu0 %v373
    %v375 = vpop.xlane.xlu0 %374
    %v376 = vsub.f32 %v339, %v372
    %v377 = vsub.f32 %v368, %v375
    %v378 = vmul.f32 %v376, 1.442695
    %v379 = vpow.pop %v378
    %v380 = vmul.f32 %v377, 1.442695
    %v381 = vpow.pop %v380
    %v382 = vsel %vm122, %v379, 0.0
    %383 = vadd.xlane.f32.xlu0 %v382
    %v384 = vpop.xlane.xlu0 %383
    %v385 = vsel %vm122, %v381, 0.0
    %386 = vadd.xlane.f32.xlu0 %v385
    %v387 = vpop.xlane.xlu0 %386
    %388 = vrot.lane.b32.xlu0 %v310, 56
    %v389 = vpop.permute.xlu0 %388
    %v392 = vsel %vm122, %v379, 0
    %394 = vmatpush.msra.mxu0 0.0
    %395 = vmatpush.msra.mxu0 0.0
    %396 = vmatpush.msra.mxu0 0.0
    %397 = vmatpush.msra.mxu0 0.0
    %398 = vmatpush.msra.mxu0 0.0
    %399 = vmatpush.msra.mxu0 0.0
    %400 = vmatpush.msra.mxu0 0.0
    %401 = vmatpush.msra.mxu0 0.0
    %402 = vmatpush.msra.mxu0 0.0
    %403 = vmatpush.msra.mxu0 0.0
    %404 = vmatpush.msra.mxu0 0.0
    %405 = vmatpush.msra.mxu0 0.0
    %406 = vmatpush.msra.mxu0 0.0
    %407 = vmatpush.msra.mxu0 0.0
    %408 = vmatpush.msra.mxu0 0.0
    %409 = vmatpush.msra.mxu0 %v389
    %410 = vmatmul.f32.gmra.mxu0 %v392
    %v411 = vpop.f32.mrf.mxu0
    %v412 = vadd.f32 0.0, %v411
    %413 = vdwg.mxu0
    %414 = vrot.lane.b32.xlu0 %v311, 56
    %v415 = vpop.permute.xlu0 %414
    %v418 = vsel %vm122, %v381, 0
    %420 = vmatpush.msra.mxu0 0.0
    %421 = vmatpush.msra.mxu0 0.0
    %422 = vmatpush.msra.mxu0 0.0
    %423 = vmatpush.msra.mxu0 0.0
    %424 = vmatpush.msra.mxu0 0.0
    %425 = vmatpush.msra.mxu0 0.0
    %426 = vmatpush.msra.mxu0 0.0
    %427 = vmatpush.msra.mxu0 0.0
    %428 = vmatpush.msra.mxu0 0.0
    %429 = vmatpush.msra.mxu0 0.0
    %430 = vmatpush.msra.mxu0 0.0
    %431 = vmatpush.msra.mxu0 0.0
    %432 = vmatpush.msra.mxu0 0.0
    %433 = vmatpush.msra.mxu0 0.0
    %434 = vmatpush.msra.mxu0 0.0
    %435 = vmatpush.msra.mxu0 %v415
    %436 = vmatmul.f32.gmra.mxu0 %v418
    %v437 = vpop.f32.mrf.mxu0
    %v438 = vadd.f32 0.0, %v437
    %439 = vdwg.mxu0
    %v440 = vrcp.pop %v384
    %v441 = vmul.f32 %v384, %v440
    %v442 = vsub.f32 1.0, %v441
    %v443 = vmul.f32 %v440, %v442
    %v444 = vadd.f32 %v440, %v443
    %vm445 = vweird.f32 %v384
    %vm446 = vweird.f32 %v440
    %vm447 = vmor %vm445, %vm446
    %v448 = vsel %vm447, %v440, %v444
    %v449 = vand.u32 2147483647, %v384
    %vm450 = vcmp.eq.f32.partialorder %v449, 8.507059e+37
    %v451 = vand.u32 %v384, 2147483648
    %v452 = vor.u32 1.1754944e-38, %v451
    %v453 = vsel %vm450, %v452, %v448
    %v454 = vrcp.pop %v387
    %v455 = vmul.f32 %v387, %v454
    %v456 = vsub.f32 1.0, %v455
    %v457 = vmul.f32 %v454, %v456
    %v458 = vadd.f32 %v454, %v457
    %vm459 = vweird.f32 %v387
    %vm460 = vweird.f32 %v454
    %vm461 = vmor %vm459, %vm460
    %v462 = vsel %vm461, %v454, %v458
    %v463 = vand.u32 2147483647, %v387
    %vm464 = vcmp.eq.f32.partialorder %v463, 8.507059e+37
    %v465 = vand.u32 %v387, 2147483648
    %v466 = vor.u32 1.1754944e-38, %v465
    %v467 = vsel %vm464, %v466, %v462
    %v468 = vmul.f32 %v412, %v453
    %v469 = vmul.f32 %v438, %v467
    %v470 = vld [vmem:[#allocation3] sm:$0xff]
    %v471 = vld [vmem:[#allocation3 + $0x8] sm:$0xff]
    %s472 = scalar_lea.vmem [#allocation9], 8
    %v473 = vld [vmem:[%s472] sm:$0xff]
    %v475 = vsel %vm122, %v468, 0
    %v478 = vsel %vm122, %v469, 0
    %480 = vmatpush.msra.mxu0 0.0
    %481 = vmatpush.msra.mxu0 0.0
    %482 = vmatpush.msra.mxu0 0.0
    %483 = vmatpush.msra.mxu0 0.0
    %484 = vmatpush.msra.mxu0 0.0
    %485 = vmatpush.msra.mxu0 0.0
    %486 = vmatpush.msra.mxu0 0.0
    %487 = vmatpush.msra.mxu0 0.0
    %488 = vmatpush.msra.mxu0 0.0
    %489 = vmatpush.msra.mxu0 0.0
    %490 = vmatpush.msra.mxu0 0.0
    %491 = vmatpush.msra.mxu0 0.0
    %492 = vmatpush.msra.mxu0 0.0
    %493 = vmatpush.msra.mxu0 0.0
    %494 = vmatpush.msra.mxu0 0.0
    %495 = vmatpush.msra.mxu0 %v473
    %496 = vmatmul.f32.gmra.mxu0 %v475
    %v497 = vpop.f32.mrf.mxu0
    %v498 = vadd.f32 0.0, %v497
    %499 = vmatmul.f32.gmra.mxu0 %v478
    %v500 = vpop.f32.mrf.mxu0
    %v501 = vadd.f32 0.0, %v500
    %502 = vdwg.mxu0
    %v503 = vadd.f32 %v470, %v498
    %v504 = vadd.f32 %v471, %v501
    %505 = vst.msk [vmem:[#allocation3] sm:$0xff] %vm78, %v503
    %506 = vst.msk [vmem:[#allocation3 + $0x8] sm:$0xff] %vm78, %v504
    %v507 = vld [vmem:[#allocation2] sm:$0xff]
    %v508 = vld [vmem:[#allocation2 + $0x8] sm:$0xff]
    %510 = vrot.lane.b32.xlu0 %v507, 112
    %v511 = vpop.permute.xlu0 %510
    %512 = vrot.lane.b32.xlu0 %v507, 80
    %v513 = vpop.permute.xlu0 %512
    %v514 = vsel %vm122, %v511, 0
    %v516 = vsel %vm122, %v513, 0
    %518 = vmatpush.xpose.msra.mxu0 0.0
    %519 = vmatpush.xpose.msra.mxu0 0.0
    %520 = vmatpush.xpose.msra.mxu0 0.0
    %521 = vmatpush.xpose.msra.mxu0 0.0
    %522 = vmatpush.xpose.msra.mxu0 0.0
    %523 = vmatpush.xpose.msra.mxu0 0.0
    %524 = vmatpush.xpose.msra.mxu0 0.0
    %525 = vmatpush.xpose.msra.mxu0 0.0
    %526 = vmatpush.xpose.msra.mxu0 0.0
    %527 = vmatpush.xpose.msra.mxu0 0.0
    %528 = vmatpush.xpose.msra.mxu0 0.0
    %529 = vmatpush.xpose.msra.mxu0 0.0
    %530 = vmatpush.xpose.msra.mxu0 0.0
    %531 = vmatpush.xpose.msra.mxu0 0.0
    %532 = vmatpush.xpose.msra.mxu0 0.0
    %533 = vmatpush.xpose.msra.mxu0 %v516
    %534 = vmatmul.f32.gmra.mxu0 %v514
    %v535 = vpop.f32.mrf.mxu0
    %v536 = vadd.f32 0.0, %v535
    %537 = vdwg.mxu0
    %539 = vrot.lane.b32.xlu0 %v508, 112
    %v540 = vpop.permute.xlu0 %539
    %541 = vrot.lane.b32.xlu0 %v508, 80
    %v542 = vpop.permute.xlu0 %541
    %v543 = vsel %vm122, %v540, 0
    %v545 = vsel %vm122, %v542, 0
    %547 = vmatpush.xpose.msra.mxu0 0.0
    %548 = vmatpush.xpose.msra.mxu0 0.0
    %549 = vmatpush.xpose.msra.mxu0 0.0
    %550 = vmatpush.xpose.msra.mxu0 0.0
    %551 = vmatpush.xpose.msra.mxu0 0.0
    %552 = vmatpush.xpose.msra.mxu0 0.0
    %553 = vmatpush.xpose.msra.mxu0 0.0
    %554 = vmatpush.xpose.msra.mxu0 0.0
    %555 = vmatpush.xpose.msra.mxu0 0.0
    %556 = vmatpush.xpose.msra.mxu0 0.0
    %557 = vmatpush.xpose.msra.mxu0 0.0
    %558 = vmatpush.xpose.msra.mxu0 0.0
    %559 = vmatpush.xpose.msra.mxu0 0.0
    %560 = vmatpush.xpose.msra.mxu0 0.0
    %561 = vmatpush.xpose.msra.mxu0 0.0
    %562 = vmatpush.xpose.msra.mxu0 %v545
    %563 = vmatmul.f32.gmra.mxu0 %v543
    %v564 = vpop.f32.mrf.mxu0
    %v565 = vadd.f32 0.0, %v564
    %566 = vdwg.mxu0
    %v567 = vsel %vm122, %v536, -inf
    %568 = vmax.xlane.f32.xlu0 %v567
    %v569 = vpop.xlane.xlu0 %568
    %v570 = vsel %vm122, %v565, -inf
    %571 = vmax.xlane.f32.xlu0 %v570
    %v572 = vpop.xlane.xlu0 %571
    %v573 = vsub.f32 %v536, %v569
    %v574 = vsub.f32 %v565, %v572
    %v575 = vmul.f32 %v573, 1.442695
    %v576 = vpow.pop %v575
    %v577 = vmul.f32 %v574, 1.442695
    %v578 = vpow.pop %v577
    %v579 = vsel %vm122, %v576, 0.0
    %580 = vadd.xlane.f32.xlu0 %v579
    %v581 = vpop.xlane.xlu0 %580
    %v582 = vsel %vm122, %v578, 0.0
    %583 = vadd.xlane.f32.xlu0 %v582
    %v584 = vpop.xlane.xlu0 %583
    %585 = vrot.lane.b32.xlu0 %v507, 48
    %v586 = vpop.permute.xlu0 %585
    %v589 = vsel %vm122, %v576, 0
    %591 = vmatpush.msra.mxu0 0.0
    %592 = vmatpush.msra.mxu0 0.0
    %593 = vmatpush.msra.mxu0 0.0
    %594 = vmatpush.msra.mxu0 0.0
    %595 = vmatpush.msra.mxu0 0.0
    %596 = vmatpush.msra.mxu0 0.0
    %597 = vmatpush.msra.mxu0 0.0
    %598 = vmatpush.msra.mxu0 0.0
    %599 = vmatpush.msra.mxu0 0.0
    %600 = vmatpush.msra.mxu0 0.0
    %601 = vmatpush.msra.mxu0 0.0
    %602 = vmatpush.msra.mxu0 0.0
    %603 = vmatpush.msra.mxu0 0.0
    %604 = vmatpush.msra.mxu0 0.0
    %605 = vmatpush.msra.mxu0 0.0
    %606 = vmatpush.msra.mxu0 %v586
    %607 = vmatmul.f32.gmra.mxu0 %v589
    %v608 = vpop.f32.mrf.mxu0
    %v609 = vadd.f32 0.0, %v608
    %610 = vdwg.mxu0
    %611 = vrot.lane.b32.xlu0 %v508, 48
    %v612 = vpop.permute.xlu0 %611
    %v615 = vsel %vm122, %v578, 0
    %617 = vmatpush.msra.mxu0 0.0
    %618 = vmatpush.msra.mxu0 0.0
    %619 = vmatpush.msra.mxu0 0.0
    %620 = vmatpush.msra.mxu0 0.0
    %621 = vmatpush.msra.mxu0 0.0
    %622 = vmatpush.msra.mxu0 0.0
    %623 = vmatpush.msra.mxu0 0.0
    %624 = vmatpush.msra.mxu0 0.0
    %625 = vmatpush.msra.mxu0 0.0
    %626 = vmatpush.msra.mxu0 0.0
    %627 = vmatpush.msra.mxu0 0.0
    %628 = vmatpush.msra.mxu0 0.0
    %629 = vmatpush.msra.mxu0 0.0
    %630 = vmatpush.msra.mxu0 0.0
    %631 = vmatpush.msra.mxu0 0.0
    %632 = vmatpush.msra.mxu0 %v612
    %633 = vmatmul.f32.gmra.mxu0 %v615
    %v634 = vpop.f32.mrf.mxu0
    %v635 = vadd.f32 0.0, %v634
    %636 = vdwg.mxu0
    %v637 = vrcp.pop %v581
    %v638 = vmul.f32 %v581, %v637
    %v639 = vsub.f32 1.0, %v638
    %v640 = vmul.f32 %v637, %v639
    %v641 = vadd.f32 %v637, %v640
    %vm642 = vweird.f32 %v581
    %vm643 = vweird.f32 %v637
    %vm644 = vmor %vm642, %vm643
    %v645 = vsel %vm644, %v637, %v641
    %v646 = vand.u32 2147483647, %v581
    %vm647 = vcmp.eq.f32.partialorder %v646, 8.507059e+37
    %v648 = vand.u32 %v581, 2147483648
    %v649 = vor.u32 1.1754944e-38, %v648
    %v650 = vsel %vm647, %v649, %v645
    %v651 = vrcp.pop %v584
    %v652 = vmul.f32 %v584, %v651
    %v653 = vsub.f32 1.0, %v652
    %v654 = vmul.f32 %v651, %v653
    %v655 = vadd.f32 %v651, %v654
    %vm656 = vweird.f32 %v584
    %vm657 = vweird.f32 %v651
    %vm658 = vmor %vm656, %vm657
    %v659 = vsel %vm658, %v651, %v655
    %v660 = vand.u32 2147483647, %v584
    %vm661 = vcmp.eq.f32.partialorder %v660, 8.507059e+37
    %v662 = vand.u32 %v584, 2147483648
    %v663 = vor.u32 1.1754944e-38, %v662
    %v664 = vsel %vm661, %v663, %v659
    %v665 = vmul.f32 %v609, %v650
    %v666 = vmul.f32 %v635, %v664
    %v667 = vld [vmem:[#allocation3] sm:$0xff]
    %v668 = vld [vmem:[#allocation3 + $0x8] sm:$0xff]
    %s669 = scalar_lea.vmem [#allocation9], 16
    %v670 = vld [vmem:[%s669] sm:$0xff]
    %v672 = vsel %vm122, %v665, 0
    %v675 = vsel %vm122, %v666, 0
    %677 = vmatpush.msra.mxu0 0.0
    %678 = vmatpush.msra.mxu0 0.0
    %679 = vmatpush.msra.mxu0 0.0
    %680 = vmatpush.msra.mxu0 0.0
    %681 = vmatpush.msra.mxu0 0.0
    %682 = vmatpush.msra.mxu0 0.0
    %683 = vmatpush.msra.mxu0 0.0
    %684 = vmatpush.msra.mxu0 0.0
    %685 = vmatpush.msra.mxu0 0.0
    %686 = vmatpush.msra.mxu0 0.0
    %687 = vmatpush.msra.mxu0 0.0
    %688 = vmatpush.msra.mxu0 0.0
    %689 = vmatpush.msra.mxu0 0.0
    %690 = vmatpush.msra.mxu0 0.0
    %691 = vmatpush.msra.mxu0 0.0
    %692 = vmatpush.msra.mxu0 %v670
    %693 = vmatmul.f32.gmra.mxu0 %v672
    %v694 = vpop.f32.mrf.mxu0
    %v695 = vadd.f32 0.0, %v694
    %696 = vmatmul.f32.gmra.mxu0 %v675
    %v697 = vpop.f32.mrf.mxu0
    %v698 = vadd.f32 0.0, %v697
    %699 = vdwg.mxu0
    %v700 = vadd.f32 %v667, %v695
    %v701 = vadd.f32 %v668, %v698
    %702 = vst.msk [vmem:[#allocation3] sm:$0xff] %vm78, %v700
    %703 = vst.msk [vmem:[#allocation3 + $0x8] sm:$0xff] %vm78, %v701
    %v704 = vld [vmem:[#allocation2] sm:$0xff]
    %v705 = vld [vmem:[#allocation2 + $0x8] sm:$0xff]
    %707 = vrot.lane.b32.xlu0 %v704, 104
    %v708 = vpop.permute.xlu0 %707
    %709 = vrot.lane.b32.xlu0 %v704, 72
    %v710 = vpop.permute.xlu0 %709
    %v711 = vsel %vm122, %v708, 0
    %v713 = vsel %vm122, %v710, 0
    %715 = vmatpush.xpose.msra.mxu0 0.0
    %716 = vmatpush.xpose.msra.mxu0 0.0
    %717 = vmatpush.xpose.msra.mxu0 0.0
    %718 = vmatpush.xpose.msra.mxu0 0.0
    %719 = vmatpush.xpose.msra.mxu0 0.0
    %720 = vmatpush.xpose.msra.mxu0 0.0
    %721 = vmatpush.xpose.msra.mxu0 0.0
    %722 = vmatpush.xpose.msra.mxu0 0.0
    %723 = vmatpush.xpose.msra.mxu0 0.0
    %724 = vmatpush.xpose.msra.mxu0 0.0
    %725 = vmatpush.xpose.msra.mxu0 0.0
    %726 = vmatpush.xpose.msra.mxu0 0.0
    %727 = vmatpush.xpose.msra.mxu0 0.0
    %728 = vmatpush.xpose.msra.mxu0 0.0
    %729 = vmatpush.xpose.msra.mxu0 0.0
    %730 = vmatpush.xpose.msra.mxu0 %v713
    %731 = vmatmul.f32.gmra.mxu0 %v711
    %v732 = vpop.f32.mrf.mxu0
    %v733 = vadd.f32 0.0, %v732
    %734 = vdwg.mxu0
    %736 = vrot.lane.b32.xlu0 %v705, 104
    %v737 = vpop.permute.xlu0 %736
    %738 = vrot.lane.b32.xlu0 %v705, 72
    %v739 = vpop.permute.xlu0 %738
    %v740 = vsel %vm122, %v737, 0
    %v742 = vsel %vm122, %v739, 0
    %744 = vmatpush.xpose.msra.mxu0 0.0
    %745 = vmatpush.xpose.msra.mxu0 0.0
    %746 = vmatpush.xpose.msra.mxu0 0.0
    %747 = vmatpush.xpose.msra.mxu0 0.0
    %748 = vmatpush.xpose.msra.mxu0 0.0
    %749 = vmatpush.xpose.msra.mxu0 0.0
    %750 = vmatpush.xpose.msra.mxu0 0.0
    %751 = vmatpush.xpose.msra.mxu0 0.0
    %752 = vmatpush.xpose.msra.mxu0 0.0
    %753 = vmatpush.xpose.msra.mxu0 0.0
    %754 = vmatpush.xpose.msra.mxu0 0.0
    %755 = vmatpush.xpose.msra.mxu0 0.0
    %756 = vmatpush.xpose.msra.mxu0 0.0
    %757 = vmatpush.xpose.msra.mxu0 0.0
    %758 = vmatpush.xpose.msra.mxu0 0.0
    %759 = vmatpush.xpose.msra.mxu0 %v742
    %760 = vmatmul.f32.gmra.mxu0 %v740
    %v761 = vpop.f32.mrf.mxu0
    %v762 = vadd.f32 0.0, %v761
    %763 = vdwg.mxu0
    %v764 = vsel %vm122, %v733, -inf
    %765 = vmax.xlane.f32.xlu0 %v764
    %v766 = vpop.xlane.xlu0 %765
    %v767 = vsel %vm122, %v762, -inf
    %768 = vmax.xlane.f32.xlu0 %v767
    %v769 = vpop.xlane.xlu0 %768
    %v770 = vsub.f32 %v733, %v766
    %v771 = vsub.f32 %v762, %v769
    %v772 = vmul.f32 %v770, 1.442695
    %v773 = vpow.pop %v772
    %v774 = vmul.f32 %v771, 1.442695
    %v775 = vpow.pop %v774
    %v776 = vsel %vm122, %v773, 0.0
    %777 = vadd.xlane.f32.xlu0 %v776
    %v778 = vpop.xlane.xlu0 %777
    %v779 = vsel %vm122, %v775, 0.0
    %780 = vadd.xlane.f32.xlu0 %v779
    %v781 = vpop.xlane.xlu0 %780
    %782 = vrot.lane.b32.xlu0 %v704, 40
    %v783 = vpop.permute.xlu0 %782
    %v786 = vsel %vm122, %v773, 0
    %788 = vmatpush.msra.mxu0 0.0
    %789 = vmatpush.msra.mxu0 0.0
    %790 = vmatpush.msra.mxu0 0.0
    %791 = vmatpush.msra.mxu0 0.0
    %792 = vmatpush.msra.mxu0 0.0
    %793 = vmatpush.msra.mxu0 0.0
    %794 = vmatpush.msra.mxu0 0.0
    %795 = vmatpush.msra.mxu0 0.0
    %796 = vmatpush.msra.mxu0 0.0
    %797 = vmatpush.msra.mxu0 0.0
    %798 = vmatpush.msra.mxu0 0.0
    %799 = vmatpush.msra.mxu0 0.0
    %800 = vmatpush.msra.mxu0 0.0
    %801 = vmatpush.msra.mxu0 0.0
    %802 = vmatpush.msra.mxu0 0.0
    %803 = vmatpush.msra.mxu0 %v783
    %804 = vmatmul.f32.gmra.mxu0 %v786
    %v805 = vpop.f32.mrf.mxu0
    %v806 = vadd.f32 0.0, %v805
    %807 = vdwg.mxu0
    %808 = vrot.lane.b32.xlu0 %v705, 40
    %v809 = vpop.permute.xlu0 %808
    %v812 = vsel %vm122, %v775, 0
    %814 = vmatpush.msra.mxu0 0.0
    %815 = vmatpush.msra.mxu0 0.0
    %816 = vmatpush.msra.mxu0 0.0
    %817 = vmatpush.msra.mxu0 0.0
    %818 = vmatpush.msra.mxu0 0.0
    %819 = vmatpush.msra.mxu0 0.0
    %820 = vmatpush.msra.mxu0 0.0
    %821 = vmatpush.msra.mxu0 0.0
    %822 = vmatpush.msra.mxu0 0.0
    %823 = vmatpush.msra.mxu0 0.0
    %824 = vmatpush.msra.mxu0 0.0
    %825 = vmatpush.msra.mxu0 0.0
    %826 = vmatpush.msra.mxu0 0.0
    %827 = vmatpush.msra.mxu0 0.0
    %828 = vmatpush.msra.mxu0 0.0
    %829 = vmatpush.msra.mxu0 %v809
    %830 = vmatmul.f32.gmra.mxu0 %v812
    %v831 = vpop.f32.mrf.mxu0
    %v832 = vadd.f32 0.0, %v831
    %833 = vdwg.mxu0
    %v834 = vrcp.pop %v778
    %v835 = vmul.f32 %v778, %v834
    %v836 = vsub.f32 1.0, %v835
    %v837 = vmul.f32 %v834, %v836
    %v838 = vadd.f32 %v834, %v837
    %vm839 = vweird.f32 %v778
    %vm840 = vweird.f32 %v834
    %vm841 = vmor %vm839, %vm840
    %v842 = vsel %vm841, %v834, %v838
    %v843 = vand.u32 2147483647, %v778
    %vm844 = vcmp.eq.f32.partialorder %v843, 8.507059e+37
    %v845 = vand.u32 %v778, 2147483648
    %v846 = vor.u32 1.1754944e-38, %v845
    %v847 = vsel %vm844, %v846, %v842
    %v848 = vrcp.pop %v781
    %v849 = vmul.f32 %v781, %v848
    %v850 = vsub.f32 1.0, %v849
    %v851 = vmul.f32 %v848, %v850
    %v852 = vadd.f32 %v848, %v851
    %vm853 = vweird.f32 %v781
    %vm854 = vweird.f32 %v848
    %vm855 = vmor %vm853, %vm854
    %v856 = vsel %vm855, %v848, %v852
    %v857 = vand.u32 2147483647, %v781
    %vm858 = vcmp.eq.f32.partialorder %v857, 8.507059e+37
    %v859 = vand.u32 %v781, 2147483648
    %v860 = vor.u32 1.1754944e-38, %v859
    %v861 = vsel %vm858, %v860, %v856
    %v862 = vmul.f32 %v806, %v847
    %v863 = vmul.f32 %v832, %v861
    %v864 = vld [vmem:[#allocation3] sm:$0xff]
    %v865 = vld [vmem:[#allocation3 + $0x8] sm:$0xff]
    %s866 = scalar_lea.vmem [#allocation9], 24
    %v867 = vld [vmem:[%s866] sm:$0xff]
    %v869 = vsel %vm122, %v862, 0
    %v872 = vsel %vm122, %v863, 0
    %874 = vmatpush.msra.mxu0 0.0
    %875 = vmatpush.msra.mxu0 0.0
    %876 = vmatpush.msra.mxu0 0.0
    %877 = vmatpush.msra.mxu0 0.0
    %878 = vmatpush.msra.mxu0 0.0
    %879 = vmatpush.msra.mxu0 0.0
    %880 = vmatpush.msra.mxu0 0.0
    %881 = vmatpush.msra.mxu0 0.0
    %882 = vmatpush.msra.mxu0 0.0
    %883 = vmatpush.msra.mxu0 0.0
    %884 = vmatpush.msra.mxu0 0.0
    %885 = vmatpush.msra.mxu0 0.0
    %886 = vmatpush.msra.mxu0 0.0
    %887 = vmatpush.msra.mxu0 0.0
    %888 = vmatpush.msra.mxu0 0.0
    %889 = vmatpush.msra.mxu0 %v867
    %890 = vmatmul.f32.gmra.mxu0 %v869
    %v891 = vpop.f32.mrf.mxu0
    %v892 = vadd.f32 0.0, %v891
    %893 = vmatmul.f32.gmra.mxu0 %v872
    %v894 = vpop.f32.mrf.mxu0
    %v895 = vadd.f32 0.0, %v894
    %896 = vdwg.mxu0
    %v897 = vadd.f32 %v864, %v892
    %v898 = vadd.f32 %v865, %v895
    %899 = vst.msk [vmem:[#allocation3] sm:$0xff] %vm78, %v897
    %900 = vst.msk [vmem:[#allocation3 + $0x8] sm:$0xff] %vm78, %v898
    %v901 = vld [vmem:[#allocation3] sm:$0xff]
    %v902 = vld [vmem:[#allocation3 + $0x8] sm:$0xff]
    %903 = vst.msk [vmem:[#allocation10] sm:$0xff] %vm78, %v901
    %904 = vst.msk [vmem:[#allocation10 + $0x8] sm:$0xff] %vm78, %v902
    // Predicated region
    $region34: #{tpu_custom_call.1} parent=1 // pred_check
      _
    $region35: #{tpu_custom_call.1} parent=1 // pred_check_branch
      %906 = sbr.rel (0) target = $region37
    $region36: #{tpu_custom_call.1} parent=1 // pred_region
      %908 = vsyncadd [#allocation6], 0
      %s909 = sshll.u32 [#allocation10], 4
      %s910 = int_to_ptr.vmem [resolvable:$true] %s909
      %s911 = sshll.u32 %s5, 4
      %s912 = int_to_ptr.hbm [resolvable:$true] %s911
      %917 = dma.vmem_to_hbm [thread:$0]  %s910, 256, %s912, [#allocation6], 128, 128, 8
    $region37: #{tpu_custom_call.1} parent=1 // pred_fallthru
      _
    // Predicated region
    $region38: #{tpu_custom_call.1} parent=1 // pred_check
      _
    $region39: #{tpu_custom_call.1} parent=1 // pred_check_branch
      %919 = sbr.rel (0) target = $region41
    $region40: #{tpu_custom_call.1} parent=1 // pred_region
      %921 = dma.done [#allocation6], 256
    $region41: #{tpu_custom_call.1} parent=1 // pred_fallthru
      _
    %922 = vsyncpa [#allocation5], 1
    %923 = vsyncpa [#allocation8], 1
    %924 = vsyncpa [#allocation6], 1

</llo_original>
